<compile_context>
chip_gen: v5e
topology: v5e:2x2
jax: 0.10.0
libtpu: 0.0.40
codegen_flags: <defaults>
</compile_context>

<pallas_src>
import functools

import jax
import jax.numpy as jnp
from jax.experimental import pallas as pl
from jax.experimental.pallas import tpu as pltpu

_MIB = 1024 * 1024


def _round_up(x: int, m: int) -> int:
    return ((x + m - 1) // m) * m


def _largest_tile(n: int, cands) -> int:
    for c in cands:
        if c <= n and n % c == 0:
            return c
    return n


def _qkv_lora_kernel(x_ref, w_ref, b_ref, ac_ref, bc_ref, o_ref,
                     acc_ref, h_ref, *, alpha):
    """grid=(m,n,k): fused base GEMM + rank-2r LoRA, f32 accumulation.

    acc += x @ W          (tm, tn)  f32 scratch, reduced over K
    h   += x @ Ac         (tm, 2r)  f32 scratch, reduced over K
    epilogue (last K step): o = acc + bias + alpha * (h @ Bc)
    """
    k = pl.program_id(2)

    @pl.when(k == 0)
    def _():
        acc_ref[...] = jnp.zeros_like(acc_ref)
        h_ref[...] = jnp.zeros_like(h_ref)

    x = x_ref[...]
    acc_ref[...] += jnp.dot(x, w_ref[...], preferred_element_type=jnp.float32)
    h_ref[...] += jnp.dot(x, ac_ref[...], preferred_element_type=jnp.float32)

    @pl.when(k == pl.num_programs(2) - 1)
    def _():
        lora = jnp.dot(h_ref[...], bc_ref[...],
                       preferred_element_type=jnp.float32)
        o_ref[...] = (acc_ref[...] + b_ref[...] + alpha * lora
                      ).astype(o_ref.dtype)


def _vmem_budget():
    """(tile-sizing budget, scoped-vmem-limit cap), generation aware."""
    cap = None
    try:  # narrow guard: hardware query only; never masks kernel errors
        cap = int(getattr(pltpu.get_tpu_info(), "vmem_capacity_bytes", 0)) or None
    except Exception:
        cap = None
    if cap is not None and cap >= 100 * _MIB:
        return 96 * _MIB, 112 * _MIB      # v5e / v6e: 128 MiB physical VMEM
    return 40 * _MIB, 52 * _MIB           # v7x-class (64 MiB/TC) or unknown


def _vmem_estimate(tm, tn, tk, r2, e_in, e_out):
    """Per-step VMEM bytes (double-buffered pipeline buffers + scratch)."""
    L = lambda v: _round_up(v, 128)       # lane padding
    S = lambda v: _round_up(v, 8)         # sublane padding
    return (2 * S(tm) * L(tk) * e_in      # x tile
            + 2 * S(tk) * L(tn) * e_in    # W tile
            + 2 * 8 * L(tn) * 4           # bias tile (f32)
            + 2 * S(tk) * L(r2) * e_in    # Ac tile
            + 2 * S(r2) * L(tn) * 4       # Bc tile (f32)
            + 2 * S(tm) * L(tn) * e_out   # output tile
            + S(tm) * L(tn) * 4           # acc scratch
            + S(tm) * L(r2) * 4)          # h scratch


def qkv_lora_forward(src, W, bias, A_q, B_q, A_v, B_v, alpha, *,
                     compute_dtype=None, tm=None):
    """Fully fused QKVLoRA forward in a single Pallas kernel.

    src : (..., dim)        activations
    W   : (dim, 3*dim)      qkv.weight.T (PyTorch stores (out, in))
    bias: (3*dim,)          qkv.bias
    A_q, A_v : (dim, rank)  LoRA down-projections
    B_q, B_v : (rank, dim)  LoRA up-projections

    compute_dtype: I/O dtype for src/W/Ac and the output. Strongly recommended:
    jnp.bfloat16 (kernel is HBM-bound; accumulation, bias and B stay f32).
    """
    dim = src.shape[-1]
    rank = A_q.shape[1]
    n_out = 3 * dim
    assert W.shape == (dim, n_out) and bias.shape == (n_out,)
    assert A_q.shape == (dim, rank) and A_v.shape == (dim, rank)
    assert B_q.shape == (rank, dim) and B_v.shape == (rank, dim)

    in_dtype = jnp.dtype(compute_dtype if compute_dtype is not None
                         else src.dtype)
    e_in = in_dtype.itemsize
    e_out = e_in
    sub = 16 if e_in < 4 else 8           # sublane granularity (bf16 packs 2x)

    lead = src.shape[:-1]
    x2d = src.reshape(-1, dim).astype(in_dtype)
    M = x2d.shape[0]

    # --- fuse both LoRA branches into a single rank-2r factorization --------
    #   Ac = [A_q | A_v]                       (dim, 2r)   same dtype as x
    #   Bc = [[B_q, 0, 0], [0, 0, B_v]]        (2r, n_pad) f32; zero blocks
    #        leave the K-column third and the lane padding untouched.
    r2 = 2 * rank
    n_pad = _round_up(n_out, 128)         # lane-dense (unmasked) output stores
    Ac = jnp.concatenate([A_q, A_v], axis=1).astype(in_dtype)
    Bc = jnp.zeros((r2, n_pad), jnp.float32)
    Bc = Bc.at[:rank, :dim].set(B_q.astype(jnp.float32))
    Bc = Bc.at[rank:, 2 * dim:n_out].set(B_v.astype(jnp.float32))

    # Pad only constant weight-sized tensors on the column axis (one-time);
    # never pad a full (M, 3*dim) activation slab in the wrapper.
    W_p = W.astype(in_dtype)
    b_p = bias.astype(jnp.float32).reshape(1, n_out)
    if n_pad != n_out:
        W_p = jnp.pad(W_p, ((0, 0), (0, n_pad - n_out)))
        b_p = jnp.pad(b_p, ((0, 0), (0, n_pad - n_out)))

    # --- tile selection (generation-aware VMEM budget) -----------------------
    budget, limit_cap = _vmem_budget()
    tk = dim if dim % 128 != 0 else _largest_tile(dim, (512, 256, 128))
    tn = _largest_tile(n_pad, (512, 256, 128))
    if tm is None:
        tm = sub
        for cand in (1024, 512, 256, 128, 64, 32, 16, 8):
            if cand % sub == 0 and _vmem_estimate(cand, tn, tk, r2,
                                                  e_in, e_out) <= budget:
                tm = cand
                break
        tm = min(tm, _round_up(M, sub))   # don't tile far past the real rows
    assert tm % sub == 0, f"tm must be a multiple of {sub} for {in_dtype}"

    # Keep >=2 "parallel" grid steps when possible (v7x has 2 TensorCores and
    # the pipeline needs something to overlap).
    m_pad = _round_up(M, tm)
    if (m_pad // tm) * (n_pad // tn) < 2 and M > sub:
        tm = _round_up((M + 1) // 2, sub)
        m_pad = _round_up(M, tm)

    grid = (m_pad // tm, n_pad // tn, dim // tk)

    x_p = x2d if m_pad == M else jnp.pad(x2d, ((0, m_pad - M), (0, 0)))

    est = _vmem_estimate(tm, tn, tk, r2, e_in, e_out)
    vmem_limit = int(min(limit_cap, max(32 * _MIB, 1.25 * est)))

    kernel = functools.partial(_qkv_lora_kernel, alpha=float(alpha))

    grid_spec = pltpu.PrefetchScalarGridSpec(
        num_scalar_prefetch=0,
        grid=grid,
        in_specs=[
            pl.BlockSpec((tm, tk), lambda i, j, k: (i, k)),   # x
            pl.BlockSpec((tk, tn), lambda i, j, k: (k, j)),   # W (padded cols)
            pl.BlockSpec((1, tn), lambda i, j, k: (0, j)),    # bias (f32)
            pl.BlockSpec((tk, r2), lambda i, j, k: (k, 0)),   # Ac
            pl.BlockSpec((r2, tn), lambda i, j, k: (0, j)),   # Bc (f32)
        ],
        out_specs=pl.BlockSpec((tm, tn), lambda i, j, k: (i, j)),
        scratch_shapes=[
            pltpu.VMEM((tm, tn), jnp.float32),                # base-GEMM acc
            pltpu.VMEM((tm, r2), jnp.float32),                # low-rank h
        ],
    )

    out_p = pl.pallas_call(
        kernel,
        out_shape=jax.ShapeDtypeStruct((m_pad, n_pad), in_dtype),
        grid_spec=grid_spec,
        compiler_params=pltpu.CompilerParams(
            dimension_semantics=("parallel", "parallel", "arbitrary"),
            vmem_limit_bytes=vmem_limit),
    )(x_p, W_p, b_p, Ac, Bc)

    return out_p[:M, :n_out].reshape(*lead, n_out)


def _reference_forward(src, W, bias, A_q, B_q, A_v, B_v, alpha):
    """Pure-JAX mirror of QKVLoRA.forward (the PyTorch spec)."""
    dim = src.shape[-1]
    qkv = src @ W + bias
    qkv = qkv.at[..., :dim].add(alpha * (src @ A_q @ B_q))
    qkv = qkv.at[..., 2 * dim:].add(alpha * (src @ A_v @ B_v))
    return qkv


if __name__ == "__main__":
    batch, seq, dim, rank, alpha = 2, 8, 32, 8, 2.0

    key = jax.random.PRNGKey(0)
    k_src, k_w, k_b, k_aq, k_av, k_bq, k_bv = jax.random.split(key, 7)

    src = jax.random.normal(k_src, (batch, seq, dim), jnp.float32)

    # Base qkv linear (weights stored pre-transposed as (in, 3*in)).
    W = jax.random.normal(k_w, (dim, 3 * dim), jnp.float32) / jnp.sqrt(
        jnp.float32(dim))
    bias = 0.1 * jax.random.normal(k_b, (3 * dim,), jnp.float32)

    # LoRALayer.__init__:  A = randn(in, r)/sqrt(r);  B = zeros(r, out).
    A_q = jax.random.normal(k_aq, (dim, rank), jnp.float32) / jnp.sqrt(
        jnp.float32(rank))
    A_v = jax.random.normal(k_av, (dim, rank), jnp.float32) / jnp.sqrt(
        jnp.float32(rank))
    B_q = jnp.zeros((rank, dim), jnp.float32)
    B_v = jnp.zeros((rank, dim), jnp.float32)

    # Tolerances allow for MXU f32-matmul precision-mode differences between
    # the fused kernel and the XLA reference (both may use bf16 passes).
    TOL = dict(atol=2e-2, rtol=2e-2)

    # 1) Fresh-init case (B == 0): LoRA contribution must be exactly zero.
    out = jax.block_until_ready(
        qkv_lora_forward(src, W, bias, A_q, B_q, A_v, B_v, alpha))
    ref = _reference_forward(src, W, bias, A_q, B_q, A_v, B_v, alpha)
    assert out.shape == ref.shape
    assert jnp.allclose(out, ref, **TOL), "mismatch (zero-B case)"

    # 2) Non-zero B: exercises both LoRA branches and the scattered adds.
    B_q_nz = 0.10 * jax.random.normal(k_bq, (rank, dim), jnp.float32)
    B_v_nz = 0.05 * jax.random.normal(k_bv, (rank, dim), jnp.float32)
    out_nz = jax.block_until_ready(
        qkv_lora_forward(src, W, bias, A_q, B_q_nz, A_v, B_v_nz, alpha))
    ref_nz = _reference_forward(src, W, bias, A_q, B_q_nz, A_v, B_v_nz, alpha)
    assert jnp.allclose(out_nz, ref_nz, **TOL), "mismatch (non-zero B case)"

    # 3) Ragged token count (M not a multiple of the sublane granularity).
    src_r = src[:, :5, :]                 # M = 10 rows
    out_r = jax.block_until_ready(
        qkv_lora_forward(src_r, W, bias, A_q, B_q_nz, A_v, B_v_nz, alpha))
    ref_r = _reference_forward(src_r, W, bias, A_q, B_q_nz, A_v, B_v_nz, alpha)
    assert jnp.allclose(out_r, ref_r, **TOL), "mismatch (ragged-M case)"

    # 4) Recommended bf16 I/O path (accumulation / bias / B stay f32 in-kernel).
    out_bf = jax.block_until_ready(
        qkv_lora_forward(src, W, bias, A_q, B_q_nz, A_v, B_v_nz, alpha,
                         compute_dtype=jnp.bfloat16))
    assert jnp.allclose(out_bf.astype(jnp.float32), ref_nz,
                        atol=0.1, rtol=0.1), "mismatch (bf16 case)"

    print("KERNEL_OK")
</pallas_src>

<mosaic_0001>
module attributes {stable_mosaic.version = 11 : i64} {
  func.func @_qkv_lora_kernel(%arg0: i32, %arg1: i32, %arg2: i32, %arg3: memref<8x32xf32, #tpu.memory_space<vmem>>, %arg4: memref<32x128xf32, #tpu.memory_space<vmem>>, %arg5: memref<1x128xf32, #tpu.memory_space<vmem>>, %arg6: memref<32x16xf32, #tpu.memory_space<vmem>>, %arg7: memref<16x128xf32, #tpu.memory_space<vmem>>, %arg8: memref<8x128xf32, #tpu.memory_space<vmem>>, %arg9: memref<8x128xf32, #tpu.memory_space<vmem>>, %arg10: memref<8x16xf32, #tpu.memory_space<vmem>>) attributes {dimension_semantics = [#tpu.dimension_semantics<parallel>, #tpu.dimension_semantics<parallel>, #tpu.dimension_semantics<arbitrary>], iteration_bounds = array<i64: 2, 1, 1>, scalar_prefetch = 0 : i64, scratch_operands = 2 : i64, tpu.core_type = #tpu.core_type<tc>, window_params = [{transform_indices = @transform_0, window_bounds = array<i64: 8, 32>}, {transform_indices = @transform_1, window_bounds = array<i64: 32, 128>}, {transform_indices = @transform_2, window_bounds = array<i64: 1, 128>}, {transform_indices = @transform_3, window_bounds = array<i64: 32, 16>}, {transform_indices = @transform_4, window_bounds = array<i64: 16, 128>}, {transform_indices = @transform_5, window_bounds = array<i64: 8, 128>}]} {
    %c0_i32 = arith.constant 0 : i32
    %0 = arith.cmpi eq, %arg2, %c0_i32 : i32
    %1 = arith.extui %0 : i1 to i32
    %c0_i32_0 = arith.constant 0 : i32
    %2 = arith.cmpi ne, %1, %c0_i32_0 : i32
    scf.if %2 {
      %cst_17 = arith.constant 0.000000e+00 : f32
      %17 = vector.broadcast %cst_17 : f32 to vector<8x128xf32>
      %c0_18 = arith.constant 0 : index
      %c0_19 = arith.constant 0 : index
      %18 = vector.load %arg9[%c0_18, %c0_19] : memref<8x128xf32, #tpu.memory_space<vmem>>, vector<8x128xf32>
      tpu.vector_store %arg9[%c0_18, %c0_19], %17 {strides = array<i32>} : memref<8x128xf32, #tpu.memory_space<vmem>>, vector<8x128xf32>,
      %cst_20 = arith.constant 0.000000e+00 : f32
      %19 = vector.broadcast %cst_20 : f32 to vector<8x16xf32>
      %c0_21 = arith.constant 0 : index
      %c0_22 = arith.constant 0 : index
      %20 = vector.load %arg10[%c0_21, %c0_22] : memref<8x16xf32, #tpu.memory_space<vmem>>, vector<8x16xf32>
      tpu.vector_store %arg10[%c0_21, %c0_22], %19 {strides = array<i32>} : memref<8x16xf32, #tpu.memory_space<vmem>>, vector<8x16xf32>,
    } else {
    }
    %c0 = arith.constant 0 : index
    %c0_1 = arith.constant 0 : index
    %3 = vector.load %arg3[%c0, %c0_1] : memref<8x32xf32, #tpu.memory_space<vmem>>, vector<8x32xf32>
    %c0_2 = arith.constant 0 : index
    %c0_3 = arith.constant 0 : index
    %4 = vector.load %arg9[%c0_2, %c0_3] : memref<8x128xf32, #tpu.memory_space<vmem>>, vector<8x128xf32>
    %c0_4 = arith.constant 0 : index
    %c0_5 = arith.constant 0 : index
    %5 = vector.load %arg4[%c0_4, %c0_5] : memref<32x128xf32, #tpu.memory_space<vmem>>, vector<32x128xf32>
    %cst = arith.constant dense<0.000000e+00> : vector<8x128xf32>
    %6 = tpu.matmul %3, %5, %cst {dimension_numbers = #tpu.dot_dimension_numbers<[1], [0], [0], [1], [0, 0, 1, 1], [], []>} : vector<8x32xf32>, vector<32x128xf32>, vector<8x128xf32> -> vector<8x128xf32>
    %7 = arith.addf %4, %6 : vector<8x128xf32>
    %c0_6 = arith.constant 0 : index
    %c0_7 = arith.constant 0 : index
    %8 = vector.load %arg9[%c0_6, %c0_7] : memref<8x128xf32, #tpu.memory_space<vmem>>, vector<8x128xf32>
    tpu.vector_store %arg9[%c0_6, %c0_7], %7 {strides = array<i32>} : memref<8x128xf32, #tpu.memory_space<vmem>>, vector<8x128xf32>,
    %c0_8 = arith.constant 0 : index
    %c0_9 = arith.constant 0 : index
    %9 = vector.load %arg10[%c0_8, %c0_9] : memref<8x16xf32, #tpu.memory_space<vmem>>, vector<8x16xf32>
    %c0_10 = arith.constant 0 : index
    %c0_11 = arith.constant 0 : index
    %10 = vector.load %arg6[%c0_10, %c0_11] : memref<32x16xf32, #tpu.memory_space<vmem>>, vector<32x16xf32>
    %cst_12 = arith.constant dense<0.000000e+00> : vector<8x16xf32>
    %11 = tpu.matmul %3, %10, %cst_12 {dimension_numbers = #tpu.dot_dimension_numbers<[1], [0], [0], [1], [0, 0, 1, 1], [], []>} : vector<8x32xf32>, vector<32x16xf32>, vector<8x16xf32> -> vector<8x16xf32>
    %12 = arith.addf %9, %11 : vector<8x16xf32>
    %c0_13 = arith.constant 0 : index
    %c0_14 = arith.constant 0 : index
    %13 = vector.load %arg10[%c0_13, %c0_14] : memref<8x16xf32, #tpu.memory_space<vmem>>, vector<8x16xf32>
    tpu.vector_store %arg10[%c0_13, %c0_14], %12 {strides = array<i32>} : memref<8x16xf32, #tpu.memory_space<vmem>>, vector<8x16xf32>,
    %c0_i32_15 = arith.constant 0 : i32
    %14 = arith.cmpi eq, %arg2, %c0_i32_15 : i32
    %15 = arith.extui %14 : i1 to i32
    %c0_i32_16 = arith.constant 0 : i32
    %16 = arith.cmpi ne, %15, %c0_i32_16 : i32
    scf.if %16 {
      %c0_17 = arith.constant 0 : index
      %c0_18 = arith.constant 0 : index
      %17 = vector.load %arg10[%c0_17, %c0_18] : memref<8x16xf32, #tpu.memory_space<vmem>>, vector<8x16xf32>
      %c0_19 = arith.constant 0 : index
      %c0_20 = arith.constant 0 : index
      %18 = vector.load %arg7[%c0_19, %c0_20] : memref<16x128xf32, #tpu.memory_space<vmem>>, vector<16x128xf32>
      %cst_21 = arith.constant dense<0.000000e+00> : vector<8x128xf32>
      %19 = tpu.matmul %17, %18, %cst_21 {dimension_numbers = #tpu.dot_dimension_numbers<[1], [0], [0], [1], [0, 0, 1, 1], [], []>} : vector<8x16xf32>, vector<16x128xf32>, vector<8x128xf32> -> vector<8x128xf32>
      %c0_22 = arith.constant 0 : index
      %c0_23 = arith.constant 0 : index
      %20 = vector.load %arg9[%c0_22, %c0_23] : memref<8x128xf32, #tpu.memory_space<vmem>>, vector<8x128xf32>
      %c0_24 = arith.constant 0 : index
      %c0_25 = arith.constant 0 : index
      %21 = vector.load %arg5[%c0_24, %c0_25] : memref<1x128xf32, #tpu.memory_space<vmem>>, vector<1x128xf32>
      %22 = vector.broadcast %21 : vector<1x128xf32> to vector<8x128xf32>
      %23 = arith.addf %20, %22 : vector<8x128xf32>
      %cst_26 = arith.constant 2.000000e+00 : f32
      %24 = vector.broadcast %cst_26 : f32 to vector<8x128xf32>
      %25 = arith.mulf %24, %19 : vector<8x128xf32>
      %26 = arith.addf %23, %25 : vector<8x128xf32>
      %c0_27 = arith.constant 0 : index
      %c0_28 = arith.constant 0 : index
      %27 = vector.load %arg8[%c0_27, %c0_28] : memref<8x128xf32, #tpu.memory_space<vmem>>, vector<8x128xf32>
      tpu.vector_store %arg8[%c0_27, %c0_28], %26 {strides = array<i32>} : memref<8x128xf32, #tpu.memory_space<vmem>>, vector<8x128xf32>,
    } else {
    }
    return
  }
  func.func @transform_0(%arg0: i32, %arg1: i32, %arg2: i32) -> (i32, i32) {
    %c0_i32 = arith.constant 0 : i32
    return %arg0, %arg2 : i32, i32
  }
  func.func @transform_1(%arg0: i32, %arg1: i32, %arg2: i32) -> (i32, i32) {
    %c0_i32 = arith.constant 0 : i32
    return %arg2, %arg1 : i32, i32
  }
  func.func @transform_2(%arg0: i32, %arg1: i32, %arg2: i32) -> (i32, i32) {
    %c0_i32 = arith.constant 0 : i32
    %c0_i32_0 = arith.constant 0 : i32
    return %c0_i32, %arg1 : i32, i32
  }
  func.func @transform_3(%arg0: i32, %arg1: i32, %arg2: i32) -> (i32, i32) {
    %c0_i32 = arith.constant 0 : i32
    %c0_i32_0 = arith.constant 0 : i32
    return %arg2, %c0_i32 : i32, i32
  }
  func.func @transform_4(%arg0: i32, %arg1: i32, %arg2: i32) -> (i32, i32) {
    %c0_i32 = arith.constant 0 : i32
    %c0_i32_0 = arith.constant 0 : i32
    return %c0_i32, %arg1 : i32, i32
  }
  func.func @transform_5(%arg0: i32, %arg1: i32, %arg2: i32) -> (i32, i32) {
    %c0_i32 = arith.constant 0 : i32
    return %arg0, %arg1 : i32, i32
  }
}

</mosaic_0001>

<llo_original>
// kernel: tpu_custom_call.1
$region0: #{tpu_custom_call.1}
  #allocation0 [shape = 'u32[]', space=smem, size = 0x4, offset = 0x4, fixed_abs, tag = 'smem constant byte address 0x4 - core index']
  #allocation1 [shape = 'u32[72,128]{1,0:T(1,128)}', space=vmem, size = 0x9000, scoped, tag = 'internal scratch']
  #allocation2 [shape = 'f32[8,128]{1,0:T(8,128)}', space=vmem, size = 0x1000, scoped, tag = 'scratch operand']
  #allocation3 [shape = 'f32[8,16]{1,0:T(8,128)}', space=vmem, size = 0x1000, scoped, tag = 'scratch operand']
  %s0 = inlined_call_operand.vmem [shape: f32[16,32], index: 0, kind: input, shape index: {}]
  %s1 = inlined_call_operand.vmem [shape: f32[32,128], index: 1, kind: input, shape index: {}]
  %s2 = inlined_call_operand.vmem [shape: f32[1,128], index: 2, kind: input, shape index: {}]
  %s3 = inlined_call_operand.vmem [shape: f32[32,16], index: 3, kind: input, shape index: {}]
  %s4 = inlined_call_operand.hbm [shape: f32[16,128], index: 4, kind: input, shape index: {}]
  %s5 = inlined_call_operand.hbm [shape: f32[16,128], index: 5, kind: output, shape index: {}]
  %s6 = sld [smem:[#allocation0]]
  $region65: #{tpu_custom_call.1} parent=0
    _
  %s8 = ssub.s32 1, %s6
  %s9 = scalar_select 0, %s8, %s6
  $region1: #{tpu_custom_call.1} parent=0
    #allocation4 [shape = 'u8[8192]{0}', space=vmem, size = 0x2000, scoped, tag = 'input window, operand 4, single buffered']
    #allocation5 [shape = 's32[2]{0}', space=sflag, size = 0x8, scoped, tag = 'scoped memory for tpu_custom_call.1']
    #allocation6 [shape = 's32[2]{0}', space=sflag, size = 0x8, scoped, tag = 'scoped memory for tpu_custom_call.1']
    #allocation7 [shape = 'u8[8192]{0}', space=vmem, size = 0x2000, scoped, tag = 'output window, operand 0']
    %10 = vsyncpa [#allocation5], 0
    %11 = vsyncpa [#allocation6], 0
    %s12 = scalar_lea.sflag [#allocation6], 1
    %13 = vsyncpa %s12, 0
    loop: start=0, step=1, limit=4
    $region2: #{tpu_custom_call.1} parent=1 // loop_pre_header
      _
    $region3: #{tpu_custom_call.1} parent=1 // loop_header
      %s15 = sphi 0, %s19
      %p16 = scmp.ge.s32.totalorder %s15, 4
      %s22 = sphi 0, %s41
      %s23 = sphi 0, %s37
      %s24 = sphi 0, %s33
      %s25 = sphi 0, %s22
      %s26 = sphi 0, %s23
      %s27 = sphi 0, %s24
      %s28 = sphi 0, %s25
      %s29 = sphi 0, %s26
      %s30 = sphi 0, %s27
      %s46 = sphi 0, %s48
      %s49 = sphi 0, %s46
      %s50 = sphi 0, %s49
      %s66 = sphi 0, %s50
      %s74 = sphi 0, %s76
      %s77 = sphi 0, %s74
      %s78 = sphi 0, %s77
      %s94 = sphi 0, %s78
      %s100 = sphi 0, %s102
      %s103 = sphi 0, %s100
      %s104 = sphi 0, %s103
      %s120 = sphi 0, %s104
      %s126 = sphi 0, %s128
      %s129 = sphi 0, %s126
      %s130 = sphi 0, %s129
      %s146 = sphi 0, %s130
      %s152 = sphi 0, %s154
      %s155 = sphi 0, %s152
      %s156 = sphi 0, %s155
      %s172 = sphi 0, %s156
      %s180 = sphi 0, %s182
      %s183 = sphi 0, %s180
      %s184 = sphi 0, %s183
      %s200 = sphi 0, %s184
    $region4: #{tpu_custom_call.1} parent=1 // loop_header_branch
      %18 = sbr.rel (%p16) target = $region8
    $region5: #{tpu_custom_call.1} parent=1 // loop_body
      %s20 = ssub.s32 %s15, 1
      %s21 = ssub.s32 %s15, 2
      %s31 = sadd.s32 1, %s24
      %p32 = scmp.ge.s32.totalorder %s31, 1
      %s33 = scalar_select %p32, 0, %s31
      %s34 = sadd.s32 1, %s23
      %s35 = scalar_select %p32, %s34, %s23
      %p36 = scmp.ge.s32.totalorder %s35, 1
      %s37 = scalar_select %p36, 0, %s35
      %s38 = sadd.s32 1, %s22
      %s39 = scalar_select %p36, %s38, %s22
      %p40 = scmp.ge.s32.totalorder %s39, 2
      %s41 = scalar_select %p40, 0, %s39
      %s42 = ssub.s32 %s22, %s41
      %s43 = ssub.s32 %s24, %s33
      %s44 = sor.u32 %s42, %s43
      %p45 = scmp.eq.s32.totalorder %s44, 0
      %s47 = sadd.s32 %s46, 1
      %s48 = scalar_select %p45, %s46, %s47
      %p51 = pneg %p45
      %p52 = scmp.eq.s32.totalorder %s15, 1
      %p53 = por %p51, %p52
      %p54 = scmp.ne.s32.totalorder %s46, %s49
      %p55 = scmp.eq.s32.totalorder %s15, 0
      %p56 = por %p54, %p55
      %p57 = scmp.ne.s32.totalorder %s46, %s49
      %p58 = scmp.eq.s32.totalorder %s20, 1
      %p59 = por %p57, %p58
      %p60 = scmp.ne.s32.totalorder %s49, %s50
      %p61 = scmp.eq.s32.totalorder %s20, 0
      %p62 = por %p60, %p61
      %p63 = scmp.ne.s32.totalorder %s49, %s50
      %p64 = scmp.eq.s32.totalorder %s21, 1
      %p65 = por %p63, %p64
      %p67 = scmp.ne.s32.totalorder %s50, %s66
      %p68 = scmp.eq.s32.totalorder %s21, 0
      %p69 = por %p67, %p68
      %s70 = ssub.s32 %s24, %s33
      %s71 = ssub.s32 %s23, %s37
      %s72 = sor.u32 %s70, %s71
      %p73 = scmp.eq.s32.totalorder %s72, 0
      %s75 = sadd.s32 %s74, 1
      %s76 = scalar_select %p73, %s74, %s75
      %p79 = pneg %p73
      %p80 = scmp.eq.s32.totalorder %s15, 1
      %p81 = por %p79, %p80
      %p82 = scmp.ne.s32.totalorder %s74, %s77
      %p83 = scmp.eq.s32.totalorder %s15, 0
      %p84 = por %p82, %p83
      %p85 = scmp.ne.s32.totalorder %s74, %s77
      %p86 = scmp.eq.s32.totalorder %s20, 1
      %p87 = por %p85, %p86
      %p88 = scmp.ne.s32.totalorder %s77, %s78
      %p89 = scmp.eq.s32.totalorder %s20, 0
      %p90 = por %p88, %p89
      %p91 = scmp.ne.s32.totalorder %s77, %s78
      %p92 = scmp.eq.s32.totalorder %s21, 1
      %p93 = por %p91, %p92
      %p95 = scmp.ne.s32.totalorder %s78, %s94
      %p96 = scmp.eq.s32.totalorder %s21, 0
      %p97 = por %p95, %p96
      %s98 = ssub.s32 %s23, %s37
      %p99 = scmp.eq.s32.totalorder %s98, 0
      %s101 = sadd.s32 %s100, 1
      %s102 = scalar_select %p99, %s100, %s101
      %p105 = pneg %p99
      %p106 = scmp.eq.s32.totalorder %s15, 1
      %p107 = por %p105, %p106
      %p108 = scmp.ne.s32.totalorder %s100, %s103
      %p109 = scmp.eq.s32.totalorder %s15, 0
      %p110 = por %p108, %p109
      %p111 = scmp.ne.s32.totalorder %s100, %s103
      %p112 = scmp.eq.s32.totalorder %s20, 1
      %p113 = por %p111, %p112
      %p114 = scmp.ne.s32.totalorder %s103, %s104
      %p115 = scmp.eq.s32.totalorder %s20, 0
      %p116 = por %p114, %p115
      %p117 = scmp.ne.s32.totalorder %s103, %s104
      %p118 = scmp.eq.s32.totalorder %s21, 1
      %p119 = por %p117, %p118
      %p121 = scmp.ne.s32.totalorder %s104, %s120
      %p122 = scmp.eq.s32.totalorder %s21, 0
      %p123 = por %p121, %p122
      %s124 = ssub.s32 %s24, %s33
      %p125 = scmp.eq.s32.totalorder %s124, 0
      %s127 = sadd.s32 %s126, 1
      %s128 = scalar_select %p125, %s126, %s127
      %p131 = pneg %p125
      %p132 = scmp.eq.s32.totalorder %s15, 1
      %p133 = por %p131, %p132
      %p134 = scmp.ne.s32.totalorder %s126, %s129
      %p135 = scmp.eq.s32.totalorder %s15, 0
      %p136 = por %p134, %p135
      %p137 = scmp.ne.s32.totalorder %s126, %s129
      %p138 = scmp.eq.s32.totalorder %s20, 1
      %p139 = por %p137, %p138
      %p140 = scmp.ne.s32.totalorder %s129, %s130
      %p141 = scmp.eq.s32.totalorder %s20, 0
      %p142 = por %p140, %p141
      %p143 = scmp.ne.s32.totalorder %s129, %s130
      %p144 = scmp.eq.s32.totalorder %s21, 1
      %p145 = por %p143, %p144
      %p147 = scmp.ne.s32.totalorder %s130, %s146
      %p148 = scmp.eq.s32.totalorder %s21, 0
      %p149 = por %p147, %p148
      %s150 = ssub.s32 %s23, %s37
      %p151 = scmp.eq.s32.totalorder %s150, 0
      %s153 = sadd.s32 %s152, 1
      %s154 = scalar_select %p151, %s152, %s153
      %p157 = pneg %p151
      %p158 = scmp.eq.s32.totalorder %s15, 1
      %p159 = por %p157, %p158
      %p160 = scmp.ne.s32.totalorder %s152, %s155
      %p161 = scmp.eq.s32.totalorder %s15, 0
      %p162 = por %p160, %p161
      %p163 = scmp.ne.s32.totalorder %s152, %s155
      %p164 = scmp.eq.s32.totalorder %s20, 1
      %p165 = por %p163, %p164
      %p166 = scmp.ne.s32.totalorder %s155, %s156
      %p167 = scmp.eq.s32.totalorder %s20, 0
      %p168 = por %p166, %p167
      %p169 = scmp.ne.s32.totalorder %s155, %s156
      %p170 = scmp.eq.s32.totalorder %s21, 1
      %p171 = por %p169, %p170
      %p173 = scmp.ne.s32.totalorder %s156, %s172
      %p174 = scmp.eq.s32.totalorder %s21, 0
      %p175 = por %p173, %p174
      %s176 = ssub.s32 %s22, %s41
      %s177 = ssub.s32 %s23, %s37
      %s178 = sor.u32 %s176, %s177
      %p179 = scmp.eq.s32.totalorder %s178, 0
      %s181 = sadd.s32 %s180, 1
      %s182 = scalar_select %p179, %s180, %s181
      %p185 = pneg %p179
      %p186 = scmp.eq.s32.totalorder %s15, 1
      %p187 = por %p185, %p186
      %p188 = scmp.ne.s32.totalorder %s180, %s183
      %p189 = scmp.eq.s32.totalorder %s15, 0
      %p190 = por %p188, %p189
      %p191 = scmp.ne.s32.totalorder %s180, %s183
      %p192 = scmp.eq.s32.totalorder %s20, 1
      %p193 = por %p191, %p192
      %p194 = scmp.ne.s32.totalorder %s183, %s184
      %p195 = scmp.eq.s32.totalorder %s20, 0
      %p196 = por %p194, %p195
      %p197 = scmp.ne.s32.totalorder %s183, %s184
      %p198 = scmp.eq.s32.totalorder %s21, 1
      %p199 = por %p197, %p198
      %p201 = scmp.ne.s32.totalorder %s184, %s200
      %p202 = scmp.eq.s32.totalorder %s21, 0
      %p203 = por %p201, %p202
      %p204 = scmp.le.s32.totalorder 1, %s15
      %p205 = scmp.lt.s32.totalorder %s15, 3
      %p206 = pnand %p204, %p205
      %p207 = pneg %p206
      // Predicated region
      $region9: #{tpu_custom_call.1} parent=5 // pred_check
        _
      $region10: #{tpu_custom_call.1} parent=5 // pred_check_branch
        %209 = sbr.rel (%p206) target = $region12
      $region11: #{tpu_custom_call.1} parent=5 // pred_region
        %s210 = ssub.s32 %s15, 1
        // Predicated region
        $region13: #{tpu_custom_call.1} parent=11 // pred_check
          %p211 = pneg %p90
        $region14: #{tpu_custom_call.1} parent=11 // pred_check_branch
          %213 = sbr.rel (%p211) target = $region16
        $region15: #{tpu_custom_call.1} parent=11 // pred_region
          %s214 = smul.u32 4, %s27
          %p215 = scmp.lt.s32.totalorder %s214, 3
          %s216 = scalar_select %p215, %s214, 3
          %p217 = scmp.lt.s32.totalorder %s26, 0
          %s218 = scalar_select %p217, %s26, 0
          %s219 = sadd.s32 %s218, %s216
          %s220 = smul.addr %s219, 8
          %s221 = scalar_lea.vmem %s1, %s220
          %s222 = smul.u32 4, %s27
        $region16: #{tpu_custom_call.1} parent=11 // pred_fallthru
          _
        // Predicated region
        $region17: #{tpu_custom_call.1} parent=11 // pred_check
          %p223 = pneg %p116
        $region18: #{tpu_custom_call.1} parent=11 // pred_check_branch
          %225 = sbr.rel (%p223) target = $region20
        $region19: #{tpu_custom_call.1} parent=11 // pred_region
          %p226 = scmp.lt.s32.totalorder %s26, 0
          %s227 = scalar_select %p226, %s26, 0
          %s228 = scalar_lea.vmem %s2, %s227
        $region20: #{tpu_custom_call.1} parent=11 // pred_fallthru
          _
        // Predicated region
        $region21: #{tpu_custom_call.1} parent=11 // pred_check
          %p229 = pneg %p142
        $region22: #{tpu_custom_call.1} parent=11 // pred_check_branch
          %231 = sbr.rel (%p229) target = $region24
        $region23: #{tpu_custom_call.1} parent=11 // pred_region
          %s232 = smul.u32 4, %s27
          %p233 = scmp.lt.s32.totalorder %s232, 3
          %s234 = scalar_select %p233, %s232, 3
          %s235 = smul.addr %s234, 8
          %s236 = scalar_lea.vmem %s3, %s235
          %s237 = smul.u32 4, %s27
        $region24: #{tpu_custom_call.1} parent=11 // pred_fallthru
          _
        // Predicated region
        $region25: #{tpu_custom_call.1} parent=11 // pred_check
          %p238 = pneg %p168
        $region26: #{tpu_custom_call.1} parent=11 // pred_check_branch
          %240 = sbr.rel (%p238) target = $region28
        $region27: #{tpu_custom_call.1} parent=11 // pred_region
          %242 = vsyncadd [#allocation5], 0
          %s243 = smul.addr %s26, 8
          %s244 = scalar_lea.hbm %s4, %s243
          %s245 = sshll.u32 %s244, 4
          %s246 = int_to_ptr.hbm [resolvable:$true] %s245
          %s247 = sshll.u32 [#allocation4], 4
          %s248 = int_to_ptr.vmem [resolvable:$true] %s247
          %253 = dma.hbm_to_vmem [thread:$0]  %s246, 256, %s248, [#allocation5], 128, 128, 8
        $region28: #{tpu_custom_call.1} parent=11 // pred_fallthru
          _
      $region12: #{tpu_custom_call.1} parent=5 // pred_fallthru
        _
      %p254 = scmp.lt.s32.totalorder %s15, 2
      // Predicated region
      $region29: #{tpu_custom_call.1} parent=5 // pred_check
        %p255 = pneg %p254
      $region30: #{tpu_custom_call.1} parent=5 // pred_check_branch
        %257 = sbr.rel (%p255) target = $region32
      $region31: #{tpu_custom_call.1} parent=5 // pred_region
        // Predicated region
        $region33: #{tpu_custom_call.1} parent=31 // pred_check
          %p258 = pneg %p56
        $region34: #{tpu_custom_call.1} parent=31 // pred_check_branch
          %260 = sbr.rel (%p258) target = $region36
        $region35: #{tpu_custom_call.1} parent=31 // pred_region
          %p261 = scmp.lt.s32.totalorder %s22, 1
          %s262 = scalar_select %p261, %s22, 1
          %p263 = scmp.lt.s32.totalorder %s24, 0
          %s264 = scalar_select %p263, %s24, 0
          %s265 = sadd.s32 %s264, %s262
          %s266 = smul.addr %s265, 8
          %s267 = scalar_lea.vmem %s0, %s266
        $region36: #{tpu_custom_call.1} parent=31 // pred_fallthru
          _
      $region32: #{tpu_custom_call.1} parent=5 // pred_fallthru
        _
      %p268 = scmp.le.s32.totalorder 1, %s15
      %p269 = scmp.lt.s32.totalorder %s15, 3
      %p270 = pnand %p268, %p269
      %p271 = pneg %p270
      // Predicated region
      $region37: #{tpu_custom_call.1} parent=5 // pred_check
        _
      $region38: #{tpu_custom_call.1} parent=5 // pred_check_branch
        %273 = sbr.rel (%p270) target = $region40
      $region39: #{tpu_custom_call.1} parent=5 // pred_region
        %s274 = ssub.s32 %s15, 1
        // Predicated region
        $region41: #{tpu_custom_call.1} parent=39 // pred_check
          %p275 = pneg %p168
        $region42: #{tpu_custom_call.1} parent=39 // pred_check_branch
          %277 = sbr.rel (%p275) target = $region44
        $region43: #{tpu_custom_call.1} parent=39 // pred_region
          %279 = dma.done [#allocation5], 256
        $region44: #{tpu_custom_call.1} parent=39 // pred_fallthru
          _
        %p280 = scmp.lt.s32.totalorder %s25, 1
        %s281 = scalar_select %p280, %s25, 1
        %p282 = scmp.lt.s32.totalorder %s27, 0
        %s283 = scalar_select %p282, %s27, 0
        %s284 = sadd.s32 %s283, %s281
        %s285 = smul.addr %s284, 8
        %s286 = scalar_lea.vmem %s0, %s285
        %p287 = pneg %p62
        %p288 = pneg %p59
        %s289 = smul.u32 4, %s27
        %p290 = scmp.lt.s32.totalorder %s289, 3
        %s291 = scalar_select %p290, %s289, 3
        %p292 = scmp.lt.s32.totalorder %s26, 0
        %s293 = scalar_select %p292, %s26, 0
        %s294 = sadd.s32 %s293, %s291
        %s295 = smul.addr %s294, 8
        %s296 = scalar_lea.vmem %s1, %s295
        %p297 = pneg %p90
        %p298 = pneg %p87
        %p299 = scmp.lt.s32.totalorder %s26, 0
        %s300 = scalar_select %p299, %s26, 0
        %s301 = scalar_lea.vmem %s2, %s300
        %p302 = pneg %p116
        %p303 = pneg %p113
        %s304 = smul.u32 4, %s27
        %p305 = scmp.lt.s32.totalorder %s304, 3
        %s306 = scalar_select %p305, %s304, 3
        %s307 = smul.addr %s306, 8
        %s308 = scalar_lea.vmem %s3, %s307
        %p309 = pneg %p142
        %p310 = pneg %p139
        %p311 = pneg %p168
        %p312 = pneg %p165
        %p313 = pneg %p196
        %p314 = pneg %p193
        %s315 = sand.u32 %s183, 1
        %s316 = scalar_lea.sflag [#allocation6], %s315
        %s317 = sand.u32 %s183, 1
        %s318 = smul.addr %s317, 8
        %s319 = scalar_lea.vmem [#allocation7], %s318
        %p320 = scmp.lt.s32.totalorder %s25, 1
        %s321 = scalar_select %p320, %s25, 1
        %p322 = scmp.lt.s32.totalorder %s27, 0
        %s323 = scalar_select %p322, %s27, 0
        %s324 = sadd.s32 %s323, %s321
        %s325 = smul.addr %s324, 8
        %s326 = scalar_lea.vmem %s0, %s325
        %s327 = smul.u32 4, %s27
        %p328 = scmp.lt.s32.totalorder %s327, 3
        %s329 = scalar_select %p328, %s327, 3
        %p330 = scmp.lt.s32.totalorder %s26, 0
        %s331 = scalar_select %p330, %s26, 0
        %s332 = sadd.s32 %s331, %s329
        %s333 = smul.addr %s332, 8
        %s334 = scalar_lea.vmem %s1, %s333
        %s335 = smul.u32 4, %s27
        %p336 = scmp.lt.s32.totalorder %s26, 0
        %s337 = scalar_select %p336, %s26, 0
        %s338 = scalar_lea.vmem %s2, %s337
        %s339 = smul.u32 4, %s27
        %p340 = scmp.lt.s32.totalorder %s339, 3
        %s341 = scalar_select %p340, %s339, 3
        %s342 = smul.addr %s341, 8
        %s343 = scalar_lea.vmem %s3, %s342
        %s344 = smul.u32 4, %s27
        %p345 = scmp.eq.s32.totalorder %s27, 0
        // Predicated region
        $region45: #{tpu_custom_call.1} parent=39 // pred_check
          %p346 = pneg %p345
        $region46: #{tpu_custom_call.1} parent=39 // pred_check_branch
          %348 = sbr.rel (%p346) target = $region48
        $region47: #{tpu_custom_call.1} parent=39 // pred_region
          %349 = vst [vmem:[#allocation2] sm:$0xff] 0.0
          %vm350 = vcmask 130048
          %351 = vst.msk [vmem:[#allocation3] sm:$0xff] %vm350, 0.0
        $region48: #{tpu_custom_call.1} parent=39 // pred_fallthru
          _
        %v352 = vld [vmem:[%s326] sm:$0xff]
        %v353 = vld [vmem:[#allocation2] sm:$0xff]
        %v354 = vld [vmem:[%s334] sm:$0xff]
        %v355 = vld [vmem:[%s334 + $0x8] sm:$0xff]
        %v356 = vld [vmem:[%s334 + $0x10] sm:$0xff]
        %v357 = vld [vmem:[%s334 + $0x18] sm:$0xff]
        %vm358 = vcmask 261120
        %v360 = vsel %vm358, %v352, 0
        %362 = vmatpush.msra.mxu0 0.0
        %363 = vmatpush.msra.mxu0 0.0
        %364 = vmatpush.msra.mxu0 0.0
        %365 = vmatpush.msra.mxu0 0.0
        %366 = vmatpush.msra.mxu0 0.0
        %367 = vmatpush.msra.mxu0 0.0
        %368 = vmatpush.msra.mxu0 0.0
        %369 = vmatpush.msra.mxu0 0.0
        %370 = vmatpush.msra.mxu0 0.0
        %371 = vmatpush.msra.mxu0 0.0
        %372 = vmatpush.msra.mxu0 0.0
        %373 = vmatpush.msra.mxu0 0.0
        %374 = vmatpush.msra.mxu0 %v357
        %375 = vmatpush.msra.mxu0 %v356
        %376 = vmatpush.msra.mxu0 %v355
        %377 = vmatpush.msra.mxu0 %v354
        %378 = vmatmul.f32.gmra.mxu0 %v360
        %v379 = vpop.f32.mrf.mxu0
        %v380 = vadd.f32 0.0, %v379
        %381 = vdwg.mxu0
        %v382 = vadd.f32 %v353, %v380
        %383 = vst [vmem:[#allocation2] sm:$0xff] %v382
        %v384 = vld [vmem:[#allocation3] sm:$0xff]
        %v385 = vld [vmem:[%s343] sm:$0xff]
        %v386 = vld [vmem:[%s343 + $0x8] sm:$0xff]
        %v387 = vld [vmem:[%s343 + $0x10] sm:$0xff]
        %v388 = vld [vmem:[%s343 + $0x18] sm:$0xff]
        %389 = vmatpush.msra.mxu0 0.0
        %390 = vmatpush.msra.mxu0 0.0
        %391 = vmatpush.msra.mxu0 0.0
        %392 = vmatpush.msra.mxu0 0.0
        %393 = vmatpush.msra.mxu0 0.0
        %394 = vmatpush.msra.mxu0 0.0
        %395 = vmatpush.msra.mxu0 0.0
        %396 = vmatpush.msra.mxu0 0.0
        %397 = vmatpush.msra.mxu0 0.0
        %398 = vmatpush.msra.mxu0 0.0
        %399 = vmatpush.msra.mxu0 0.0
        %400 = vmatpush.msra.mxu0 0.0
        %401 = vmatpush.msra.mxu0 %v388
        %402 = vmatpush.msra.mxu0 %v387
        %403 = vmatpush.msra.mxu0 %v386
        %404 = vmatpush.msra.mxu0 %v385
        %405 = vmatmul.f32.gmra.mxu0 %v360
        %v406 = vpop.f32.mrf.mxu0
        %v407 = vadd.f32 0.0, %v406
        %408 = vdwg.mxu0
        %v409 = vadd.f32 %v384, %v407
        %vm410 = vcmask 130048
        %411 = vst.msk [vmem:[#allocation3] sm:$0xff] %vm410, %v409
        // Predicated region
        $region49: #{tpu_custom_call.1} parent=39 // pred_check
          %p412 = pneg %p345
        $region50: #{tpu_custom_call.1} parent=39 // pred_check_branch
          %414 = sbr.rel (%p412) target = $region52
        $region51: #{tpu_custom_call.1} parent=39 // pred_region
          %v415 = vld [vmem:[#allocation3] sm:$0xff]
          %v416 = vld [vmem:[#allocation4] sm:$0xff]
          %v417 = vld [vmem:[#allocation4 + $0x8] sm:$0xff]
          %v419 = vsel %vm410, %v415, 0
          %421 = vmatpush.msra.mxu0 0.0
          %422 = vmatpush.msra.mxu0 0.0
          %423 = vmatpush.msra.mxu0 0.0
          %424 = vmatpush.msra.mxu0 0.0
          %425 = vmatpush.msra.mxu0 0.0
          %426 = vmatpush.msra.mxu0 0.0
          %427 = vmatpush.msra.mxu0 0.0
          %428 = vmatpush.msra.mxu0 0.0
          %429 = vmatpush.msra.mxu0 0.0
          %430 = vmatpush.msra.mxu0 0.0
          %431 = vmatpush.msra.mxu0 0.0
          %432 = vmatpush.msra.mxu0 0.0
          %433 = vmatpush.msra.mxu0 0.0
          %434 = vmatpush.msra.mxu0 0.0
          %435 = vmatpush.msra.mxu0 %v417
          %436 = vmatpush.msra.mxu0 %v416
          %437 = vmatmul.f32.gmra.mxu0 %v419
          %v438 = vpop.f32.mrf.mxu0
          %v439 = vadd.f32 0.0, %v438
          %440 = vdwg.mxu0
          %v441 = vld [vmem:[#allocation2] sm:$0xff]
          %v442 = vld [vmem:[%s338] sm:$0x1]
          %v444 = vperm.slane %v442, 0
          %v446 = vadd.f32 %v441, %v444
          %v447 = vmul.f32 %v439, 2.0
          %v448 = vadd.f32 %v446, %v447
          %449 = vst [vmem:[%s319] sm:$0xff] %v448
        $region52: #{tpu_custom_call.1} parent=39 // pred_fallthru
          _
        %s450 = sand.u32 %s183, 1
        %s451 = scalar_lea.sflag [#allocation6], %s450
        %s452 = sand.u32 %s183, 1
        %s453 = smul.addr %s452, 8
        %s454 = scalar_lea.vmem [#allocation7], %s453
        // Predicated region
        $region53: #{tpu_custom_call.1} parent=39 // pred_check
          %p455 = pneg %p193
        $region54: #{tpu_custom_call.1} parent=39 // pred_check_branch
          %457 = sbr.rel (%p455) target = $region56
        $region55: #{tpu_custom_call.1} parent=39 // pred_region
          %459 = vsyncadd %s451, 0
          %s460 = sadd.s32 %s26, %s25
          %s461 = smul.addr %s460, 8
          %s462 = scalar_lea.hbm %s5, %s461
          %s464 = sshll.u32 %s454, 4
          %s465 = int_to_ptr.vmem [resolvable:$true] %s464
          %s466 = sshll.u32 %s462, 4
          %s467 = int_to_ptr.hbm [resolvable:$true] %s466
          %469 = dma.vmem_to_hbm [thread:$0]  %s465, 128, %s467, %s451
        $region56: #{tpu_custom_call.1} parent=39 // pred_fallthru
          _
      $region40: #{tpu_custom_call.1} parent=5 // pred_fallthru
        _
      %p470 = scmp.le.s32.totalorder 2, %s15
      // Predicated region
      $region57: #{tpu_custom_call.1} parent=5 // pred_check
        %p471 = pneg %p470
      $region58: #{tpu_custom_call.1} parent=5 // pred_check_branch
        %473 = sbr.rel (%p471) target = $region60
      $region59: #{tpu_custom_call.1} parent=5 // pred_region
        %s474 = ssub.s32 %s15, 2
        // Predicated region
        $region61: #{tpu_custom_call.1} parent=59 // pred_check
          %p475 = pneg %p199
        $region62: #{tpu_custom_call.1} parent=59 // pred_check_branch
          %477 = sbr.rel (%p475) target = $region64
        $region63: #{tpu_custom_call.1} parent=59 // pred_region
          %s478 = sand.u32 %s184, 1
          %s479 = scalar_lea.sflag [#allocation6], %s478
          %s480 = sand.u32 %s184, 1
          %s481 = smul.addr %s480, 8
          %s482 = scalar_lea.vmem [#allocation7], %s481
          %484 = dma.done %s479, 128
        $region64: #{tpu_custom_call.1} parent=59 // pred_fallthru
          _
      $region60: #{tpu_custom_call.1} parent=5 // pred_fallthru
        _
    $region6: #{tpu_custom_call.1} parent=1 // loop_footer
      %s19 = sadd.s32 1, %s15
    $region7: #{tpu_custom_call.1} parent=1 // loop_footer_branch
      %14 = sbr.rel target = $region3
    $region8: #{tpu_custom_call.1} parent=1 // loop_exit
      _
    %485 = vsyncpa [#allocation5], 1
    %s486 = scalar_lea.sflag [#allocation5], 1
    %487 = vsyncpa %s486, 1
    %488 = vsyncpa [#allocation6], 1
    %s489 = scalar_lea.sflag [#allocation6], 1
    %490 = vsyncpa %s489, 1

</llo_original>
